<compile_context>
chip_gen: v6e
topology: v6e:2x2x1
jax: 0.10.0
libtpu: 0.0.40
codegen_flags: <defaults>
</compile_context>

<pallas_src>
import jax
import jax.numpy as jnp
from jax.experimental import pallas as pl
from jax.experimental.pallas import tpu as pltpu


def _round_up(x, m):
    return (x + m - 1) // m * m


def _resident_spec(block_shape, index_map):
    """BlockSpec for weight-like inputs whose block index never changes.

    Requests single-buffering (double-buffering a constant block just doubles
    its VMEM footprint); falls back to the default pipelining if this jax
    version does not expose pipeline_mode / Buffered.
    """
    try:
        return pl.BlockSpec(block_shape, index_map, pipeline_mode=pl.Buffered(1))
    except Exception:  # older jax: no pipeline_mode kwarg
        return pl.BlockSpec(block_shape, index_map)


def mlp_kernel(x_ref, w1_ref, b1_ref, w2_ref, b2_ref, o_ref):
    # fc1 on the MXU (f32 accumulation); bias + ReLU on the VPU.
    h = jnp.dot(x_ref[...], w1_ref[...], preferred_element_type=jnp.float32)
    h = jnp.maximum(h + b1_ref[...], 0.0)
    # fc2 (hidden -> 1): VPU multiply with the (1, hidden) weight row + XLU lane
    # reduce, avoiding a second MXU dispatch for what is a dot product.
    y = jnp.sum(h * w2_ref[...], axis=-1, keepdims=True) + b2_ref[0, 0]
    # Sigmoid routed to the EUP: sigmoid(y) = 0.5 * (tanh(y/2) + 1).
    o_ref[...] = 0.5 * (jnp.tanh(0.5 * y) + 1.0)


def rna_classifier_forward(x, w1, b1, w2, b2, *, matmul_dtype=jnp.bfloat16):
    """sigmoid(relu(x @ w1 + b1) @ w2 + b2) -> (B, 1) float32."""
    B, input_size = x.shape
    hidden = w1.shape[1]

    # --- cheap layout plumbing (no extra full pass over x) --------------------
    x_mm = x.astype(matmul_dtype)
    w1_mm = w1.astype(matmul_dtype)
    b1_row = jnp.reshape(b1, (1, hidden)).astype(jnp.float32)
    w2_row = jnp.reshape(w2, (1, hidden)).astype(jnp.float32)
    b2_s = jnp.reshape(b2, (1, 1)).astype(jnp.float32)   # SMEM scalar

    # Batch tiling: tiles up to 1024 rows amortize per-step overhead; always
    # keep >= 2 grid steps so both v7x TensorCores get work; tile rows are a
    # multiple of 8 so the pad on x stays tiny.
    nb = max(2, pl.cdiv(B, 1024))
    TB = max(8, _round_up(pl.cdiv(B, nb), 8))
    B_pad = nb * TB
    if B_pad != B:
        x_mm = jnp.pad(x_mm, ((0, B_pad - B), (0, 0)))

    x_itemsize = jnp.dtype(matmul_dtype).itemsize

    # VMEM budget: double-buffered x tile, single-buffered weights, small bias /
    # fc2 rows, (8,128)-padded (TB,1) output tiles, f32 hidden intermediate.
    vmem_est = (2 * TB * input_size * x_itemsize
                + input_size * hidden * x_itemsize
                + 4 * hidden * 4
                + 2 * TB * 512
                + 4 * TB * hidden)
    vmem_limit = int(min(max(2 * vmem_est, 16 * 1024 * 1024), 48 * 1024 * 1024))

    flops = 2 * B_pad * input_size * hidden + 4 * B_pad * hidden
    bytes_accessed = (B_pad * input_size * x_itemsize
                      + input_size * hidden * x_itemsize
                      + (2 * hidden + 1) * 4
                      + B_pad * 4)

    out_pad = pl.pallas_call(
        mlp_kernel,
        out_shape=jax.ShapeDtypeStruct((B_pad, 1), jnp.float32),
        grid_spec=pltpu.PrefetchScalarGridSpec(
            num_scalar_prefetch=0,
            grid=(nb,),
            in_specs=[
                pl.BlockSpec((TB, input_size), lambda i: (i, 0)),        # x (streamed)
                _resident_spec((input_size, hidden), lambda i: (0, 0)),  # w1 (resident)
                _resident_spec((1, hidden), lambda i: (0, 0)),           # b1 row
                _resident_spec((1, hidden), lambda i: (0, 0)),           # w2 row
                pl.BlockSpec(memory_space=pltpu.MemorySpace.SMEM),       # b2 scalar
            ],
            out_specs=pl.BlockSpec((TB, 1), lambda i: (i, 0)),
        ),
        compiler_params=pltpu.CompilerParams(
            dimension_semantics=("parallel",),
            vmem_limit_bytes=vmem_limit),
        cost_estimate=pl.CostEstimate(
            flops=flops, transcendentals=B_pad, bytes_accessed=bytes_accessed),
    )(x_mm, w1_mm, b1_row, w2_row, b2_s)

    # Drop batch padding; output already lane-narrow (no 128x slab).
    return out_pad[:B]


def init_params(key, input_size, hidden_size):
    # Deterministic init mimicking nn.Linear default (uniform +/- 1/sqrt(fan_in)).
    k1, k2, k3, k4 = jax.random.split(key, 4)
    bound1 = 1.0 / jnp.sqrt(input_size)
    bound2 = 1.0 / jnp.sqrt(hidden_size)
    w1 = jax.random.uniform(k1, (input_size, hidden_size), jnp.float32, -bound1, bound1)
    b1 = jax.random.uniform(k2, (hidden_size,), jnp.float32, -bound1, bound1)
    w2 = jax.random.uniform(k3, (hidden_size, 1), jnp.float32, -bound2, bound2)
    b2 = jax.random.uniform(k4, (1,), jnp.float32, -bound2, bound2)
    return w1, b1, w2, b2


if __name__ == "__main__":
    key = jax.random.PRNGKey(0)
    kx, kp = jax.random.split(key)

    batch, input_size, hidden_size = 8, 16, 32
    x = jax.random.normal(kx, (batch, input_size), jnp.float32)
    w1, b1, w2, b2 = init_params(kp, input_size, hidden_size)

    # Pure-JAX f32 reference.
    h_ref = jnp.maximum(x @ w1 + b1[None, :], 0.0)
    y_ref = jax.nn.sigmoid(h_ref @ w2 + b2[None, :])

    # Exact-path check (f32 MXU).
    out_f32 = jax.block_until_ready(
        rna_classifier_forward(x, w1, b1, w2, b2, matmul_dtype=jnp.float32))
    assert out_f32.shape == (batch, 1)
    assert jnp.allclose(out_f32, y_ref, atol=1e-5, rtol=1e-5)

    # Default path: bf16 fc1 matmul (native MXU rate on v6e/v7x), f32 accumulate.
    out_bf16 = jax.block_until_ready(rna_classifier_forward(x, w1, b1, w2, b2))
    assert out_bf16.shape == (batch, 1)
    assert jnp.allclose(out_bf16, y_ref, atol=2e-2, rtol=2e-2)

    print("KERNEL_OK")
</pallas_src>

<mosaic_0001>
module attributes {stable_mosaic.version = 11 : i64} {
  func.func @mlp_kernel(%arg0: i32, %arg1: memref<8x16xf32, #tpu.memory_space<vmem>>, %arg2: memref<16x32xf32, #tpu.memory_space<vmem>>, %arg3: memref<1x32xf32, #tpu.memory_space<vmem>>, %arg4: memref<1x32xf32, #tpu.memory_space<vmem>>, %arg5: memref<1x1xf32, #tpu.memory_space<smem>>, %arg6: memref<8x1xf32, #tpu.memory_space<vmem>>) attributes {dimension_semantics = [#tpu.dimension_semantics<parallel>], iteration_bounds = array<i64: 2>, scalar_prefetch = 0 : i64, scratch_operands = 0 : i64, tpu.core_type = #tpu.core_type<tc>, window_params = [{transform_indices = @transform_0, window_bounds = array<i64: 8, 16>}, {pipeline_mode = #tpu.pipeline_mode<synchronous>, transform_indices = @transform_1, window_bounds = array<i64: 16, 32>}, {pipeline_mode = #tpu.pipeline_mode<synchronous>, transform_indices = @transform_2, window_bounds = array<i64: 1, 32>}, {pipeline_mode = #tpu.pipeline_mode<synchronous>, transform_indices = @transform_3, window_bounds = array<i64: 1, 32>}, {transform_indices = @transform_4, window_bounds = array<i64: 1, 1>}, {transform_indices = @transform_5, window_bounds = array<i64: 8, 1>}]} {
    %c0 = arith.constant 0 : index
    %c0_0 = arith.constant 0 : index
    %0 = vector.load %arg1[%c0, %c0_0] : memref<8x16xf32, #tpu.memory_space<vmem>>, vector<8x16xf32>
    %c0_1 = arith.constant 0 : index
    %c0_2 = arith.constant 0 : index
    %1 = vector.load %arg2[%c0_1, %c0_2] : memref<16x32xf32, #tpu.memory_space<vmem>>, vector<16x32xf32>
    %cst = arith.constant dense<0.000000e+00> : vector<8x32xf32>
    %2 = tpu.matmul %0, %1, %cst {dimension_numbers = #tpu.dot_dimension_numbers<[1], [0], [0], [1], [0, 0, 1, 1], [], []>} : vector<8x16xf32>, vector<16x32xf32>, vector<8x32xf32> -> vector<8x32xf32>
    %c0_3 = arith.constant 0 : index
    %c0_4 = arith.constant 0 : index
    %3 = vector.load %arg3[%c0_3, %c0_4] : memref<1x32xf32, #tpu.memory_space<vmem>>, vector<1x32xf32>
    %4 = vector.broadcast %3 : vector<1x32xf32> to vector<8x32xf32>
    %5 = arith.addf %2, %4 : vector<8x32xf32>
    %cst_5 = arith.constant 0.000000e+00 : f32
    %6 = vector.broadcast %cst_5 : f32 to vector<8x32xf32>
    %7 = arith.maximumf %5, %6 : vector<8x32xf32>
    %c0_6 = arith.constant 0 : index
    %c0_7 = arith.constant 0 : index
    %8 = vector.load %arg4[%c0_6, %c0_7] : memref<1x32xf32, #tpu.memory_space<vmem>>, vector<1x32xf32>
    %9 = vector.broadcast %8 : vector<1x32xf32> to vector<8x32xf32>
    %10 = arith.mulf %7, %9 : vector<8x32xf32>
    %cst_8 = arith.constant dense<0.000000e+00> : vector<8xf32>
    %11 = vector.multi_reduction <add>, %10, %cst_8 [1] : vector<8x32xf32> to vector<8xf32>
    %12 = vector.shape_cast %11 : vector<8xf32> to vector<8x1xf32>
    %c0_9 = arith.constant 0 : index
    %c0_10 = arith.constant 0 : index
    %13 = memref.load %arg5[%c0_9, %c0_10] : memref<1x1xf32, #tpu.memory_space<smem>>
    %14 = vector.broadcast %13 : f32 to vector<8x1xf32>
    %15 = arith.addf %12, %14 : vector<8x1xf32>
    %cst_11 = arith.constant 5.000000e-01 : f32
    %16 = vector.broadcast %cst_11 : f32 to vector<8x1xf32>
    %17 = arith.mulf %16, %15 : vector<8x1xf32>
    %18 = math.tanh %17 : vector<8x1xf32>
    %cst_12 = arith.constant 1.000000e+00 : f32
    %19 = vector.broadcast %cst_12 : f32 to vector<8x1xf32>
    %20 = arith.addf %18, %19 : vector<8x1xf32>
    %cst_13 = arith.constant 5.000000e-01 : f32
    %21 = vector.broadcast %cst_13 : f32 to vector<8x1xf32>
    %22 = arith.mulf %21, %20 : vector<8x1xf32>
    %c0_14 = arith.constant 0 : index
    %c0_15 = arith.constant 0 : index
    %23 = vector.load %arg6[%c0_14, %c0_15] : memref<8x1xf32, #tpu.memory_space<vmem>>, vector<8x1xf32>
    tpu.vector_store %arg6[%c0_14, %c0_15], %22 {strides = array<i32>} : memref<8x1xf32, #tpu.memory_space<vmem>>, vector<8x1xf32>,
    return
  }
  func.func @transform_0(%arg0: i32) -> (i32, i32) {
    %c0_i32 = arith.constant 0 : i32
    %c0_i32_0 = arith.constant 0 : i32
    return %arg0, %c0_i32 : i32, i32
  }
  func.func @transform_1(%arg0: i32) -> (i32, i32) {
    %c0_i32 = arith.constant 0 : i32
    %c0_i32_0 = arith.constant 0 : i32
    %c0_i32_1 = arith.constant 0 : i32
    return %c0_i32, %c0_i32_0 : i32, i32
  }
  func.func @transform_2(%arg0: i32) -> (i32, i32) {
    %c0_i32 = arith.constant 0 : i32
    %c0_i32_0 = arith.constant 0 : i32
    %c0_i32_1 = arith.constant 0 : i32
    return %c0_i32, %c0_i32_0 : i32, i32
  }
  func.func @transform_3(%arg0: i32) -> (i32, i32) {
    %c0_i32 = arith.constant 0 : i32
    %c0_i32_0 = arith.constant 0 : i32
    %c0_i32_1 = arith.constant 0 : i32
    return %c0_i32, %c0_i32_0 : i32, i32
  }
  func.func @transform_4(%arg0: i32) -> (i32, i32) {
    %c0_i32 = arith.constant 0 : i32
    %c0_i32_0 = arith.constant 0 : i32
    %c0_i32_1 = arith.constant 0 : i32
    return %c0_i32, %c0_i32_0 : i32, i32
  }
  func.func @transform_5(%arg0: i32) -> (i32, i32) {
    %c0_i32 = arith.constant 0 : i32
    %c0_i32_0 = arith.constant 0 : i32
    return %arg0, %c0_i32 : i32, i32
  }
}

</mosaic_0001>

<llo_original>
// kernel: tpu_custom_call.1
$region0: #{tpu_custom_call.1}
  #allocation0 [shape = 'u32[]', space=smem, size = 0x4, offset = 0x4, fixed_abs, tag = 'smem constant byte address 0x4 - core index']
  #allocation1 [shape = 'u32[144,128]{1,0:T(1,128)}', space=vmem, size = 0x12000, scoped, tag = 'internal scratch']
  #allocation2 [shape = 'f32[1,1]{1,0:T(1,128)S(6)}', space=smem, size = 0x200, scoped, tag = 'scoped memory for tpu_custom_call.1']
  %s0 = inlined_call_operand.hbm [shape: f32[16,16], index: 0, kind: input, shape index: {}]
  %s1 = inlined_call_operand.hbm [shape: f32[16,32], index: 1, kind: input, shape index: {}]
  %s2 = inlined_call_operand.vmem [shape: f32[1,32], index: 2, kind: input, shape index: {}]
  %s3 = inlined_call_operand.vmem [shape: f32[1,32], index: 3, kind: input, shape index: {}]
  %s4 = inlined_call_operand.<no memory space> [shape: f32[1,1], index: 4, kind: input, shape index: {}]
  %s5 = inlined_call_operand.vmem [shape: f32[16,1], index: 5, kind: output, shape index: {}]
  %s6 = sld [smem:[#allocation0]]
  $region61: #{tpu_custom_call.1} parent=0
    _
  %s8 = ssub.s32 1, %s6
  %s9 = scalar_select 0, %s8, %s6
  %10 = sst [smem:[#allocation2]] %s4
  $region1: #{tpu_custom_call.1} parent=0
    #allocation3 [shape = 'u8[8192]{0}', space=vmem, size = 0x2000, scoped, tag = 'input window, operand 0']
    #allocation4 [shape = 's32[2]{0}', space=sflag, size = 0x8, scoped, tag = 'scoped memory for tpu_custom_call.1']
    #allocation5 [shape = 'u8[8192]{0}', space=vmem, size = 0x2000, scoped, tag = 'input window, operand 1, single buffered']
    #allocation6 [shape = 's32[1]{0}', space=sflag, size = 0x4, scoped, tag = 'scoped memory for tpu_custom_call.1']
    %11 = vsyncpa [#allocation4], 0
    %s12 = scalar_lea.sflag [#allocation4], 1
    %13 = vsyncpa %s12, 0
    %14 = vsyncpa [#allocation6], 0
    loop: start=0, step=1, limit=4
    $region2: #{tpu_custom_call.1} parent=1 // loop_pre_header
      _
    $region3: #{tpu_custom_call.1} parent=1 // loop_header
      %s16 = sphi 0, %s20
      %p17 = scmp.ge.s32.totalorder %s16, 4
      %s26 = sphi 0, %s28
      %s29 = sphi 0, %s26
      %s30 = sphi 0, %s29
      %s46 = sphi 0, %s30
      %s50 = sphi 0, %s50
      %s52 = sphi 0, %s50
      %s53 = sphi 0, %s52
      %s67 = sphi 0, %s53
      %s71 = sphi 0, %s71
      %s73 = sphi 0, %s71
      %s74 = sphi 0, %s73
      %s88 = sphi 0, %s74
      %s92 = sphi 0, %s92
      %s94 = sphi 0, %s92
      %s95 = sphi 0, %s94
      %s109 = sphi 0, %s95
      %s113 = sphi 0, %s113
      %s115 = sphi 0, %s113
      %s116 = sphi 0, %s115
      %s130 = sphi 0, %s116
      %s136 = sphi 0, %s138
      %s139 = sphi 0, %s136
      %s140 = sphi 0, %s139
      %s156 = sphi 0, %s140
    $region4: #{tpu_custom_call.1} parent=1 // loop_header_branch
      %19 = sbr.rel (%p17) target = $region8
    $region5: #{tpu_custom_call.1} parent=1 // loop_body
      %s21 = ssub.s32 %s16, 1
      %s22 = ssub.s32 %s16, 2
      %s23 = sadd.s32 %s16, 1
      %s24 = ssub.s32 %s16, %s23
      %p25 = scmp.eq.s32.totalorder %s24, 0
      %s27 = sadd.s32 %s26, 1
      %s28 = scalar_select %p25, %s26, %s27
      %p31 = pneg %p25
      %p32 = scmp.eq.s32.totalorder %s16, 1
      %p33 = por %p31, %p32
      %p34 = scmp.ne.s32.totalorder %s26, %s29
      %p35 = scmp.eq.s32.totalorder %s16, 0
      %p36 = por %p34, %p35
      %p37 = scmp.ne.s32.totalorder %s26, %s29
      %p38 = scmp.eq.s32.totalorder %s21, 1
      %p39 = por %p37, %p38
      %p40 = scmp.ne.s32.totalorder %s29, %s30
      %p41 = scmp.eq.s32.totalorder %s21, 0
      %p42 = por %p40, %p41
      %p43 = scmp.ne.s32.totalorder %s29, %s30
      %p44 = scmp.eq.s32.totalorder %s22, 1
      %p45 = por %p43, %p44
      %p47 = scmp.ne.s32.totalorder %s30, %s46
      %p48 = scmp.eq.s32.totalorder %s22, 0
      %p49 = por %p47, %p48
      %s51 = sadd.s32 %s50, 1
      %p54 = scmp.eq.s32.totalorder %s16, 1
      %p55 = scmp.ne.s32.totalorder %s50, %s52
      %p56 = scmp.eq.s32.totalorder %s16, 0
      %p57 = por %p55, %p56
      %p58 = scmp.ne.s32.totalorder %s50, %s52
      %p59 = scmp.eq.s32.totalorder %s21, 1
      %p60 = por %p58, %p59
      %p61 = scmp.ne.s32.totalorder %s52, %s53
      %p62 = scmp.eq.s32.totalorder %s21, 0
      %p63 = por %p61, %p62
      %p64 = scmp.ne.s32.totalorder %s52, %s53
      %p65 = scmp.eq.s32.totalorder %s22, 1
      %p66 = por %p64, %p65
      %p68 = scmp.ne.s32.totalorder %s53, %s67
      %p69 = scmp.eq.s32.totalorder %s22, 0
      %p70 = por %p68, %p69
      %s72 = sadd.s32 %s71, 1
      %p75 = scmp.eq.s32.totalorder %s16, 1
      %p76 = scmp.ne.s32.totalorder %s71, %s73
      %p77 = scmp.eq.s32.totalorder %s16, 0
      %p78 = por %p76, %p77
      %p79 = scmp.ne.s32.totalorder %s71, %s73
      %p80 = scmp.eq.s32.totalorder %s21, 1
      %p81 = por %p79, %p80
      %p82 = scmp.ne.s32.totalorder %s73, %s74
      %p83 = scmp.eq.s32.totalorder %s21, 0
      %p84 = por %p82, %p83
      %p85 = scmp.ne.s32.totalorder %s73, %s74
      %p86 = scmp.eq.s32.totalorder %s22, 1
      %p87 = por %p85, %p86
      %p89 = scmp.ne.s32.totalorder %s74, %s88
      %p90 = scmp.eq.s32.totalorder %s22, 0
      %p91 = por %p89, %p90
      %s93 = sadd.s32 %s92, 1
      %p96 = scmp.eq.s32.totalorder %s16, 1
      %p97 = scmp.ne.s32.totalorder %s92, %s94
      %p98 = scmp.eq.s32.totalorder %s16, 0
      %p99 = por %p97, %p98
      %p100 = scmp.ne.s32.totalorder %s92, %s94
      %p101 = scmp.eq.s32.totalorder %s21, 1
      %p102 = por %p100, %p101
      %p103 = scmp.ne.s32.totalorder %s94, %s95
      %p104 = scmp.eq.s32.totalorder %s21, 0
      %p105 = por %p103, %p104
      %p106 = scmp.ne.s32.totalorder %s94, %s95
      %p107 = scmp.eq.s32.totalorder %s22, 1
      %p108 = por %p106, %p107
      %p110 = scmp.ne.s32.totalorder %s95, %s109
      %p111 = scmp.eq.s32.totalorder %s22, 0
      %p112 = por %p110, %p111
      %s114 = sadd.s32 %s113, 1
      %p117 = scmp.eq.s32.totalorder %s16, 1
      %p118 = scmp.ne.s32.totalorder %s113, %s115
      %p119 = scmp.eq.s32.totalorder %s16, 0
      %p120 = por %p118, %p119
      %p121 = scmp.ne.s32.totalorder %s113, %s115
      %p122 = scmp.eq.s32.totalorder %s21, 1
      %p123 = por %p121, %p122
      %p124 = scmp.ne.s32.totalorder %s115, %s116
      %p125 = scmp.eq.s32.totalorder %s21, 0
      %p126 = por %p124, %p125
      %p127 = scmp.ne.s32.totalorder %s115, %s116
      %p128 = scmp.eq.s32.totalorder %s22, 1
      %p129 = por %p127, %p128
      %p131 = scmp.ne.s32.totalorder %s116, %s130
      %p132 = scmp.eq.s32.totalorder %s22, 0
      %p133 = por %p131, %p132
      %s134 = ssub.s32 %s16, %s23
      %p135 = scmp.eq.s32.totalorder %s134, 0
      %s137 = sadd.s32 %s136, 1
      %s138 = scalar_select %p135, %s136, %s137
      %p141 = pneg %p135
      %p142 = scmp.eq.s32.totalorder %s16, 1
      %p143 = por %p141, %p142
      %p144 = scmp.ne.s32.totalorder %s136, %s139
      %p145 = scmp.eq.s32.totalorder %s16, 0
      %p146 = por %p144, %p145
      %p147 = scmp.ne.s32.totalorder %s136, %s139
      %p148 = scmp.eq.s32.totalorder %s21, 1
      %p149 = por %p147, %p148
      %p150 = scmp.ne.s32.totalorder %s139, %s140
      %p151 = scmp.eq.s32.totalorder %s21, 0
      %p152 = por %p150, %p151
      %p153 = scmp.ne.s32.totalorder %s139, %s140
      %p154 = scmp.eq.s32.totalorder %s22, 1
      %p155 = por %p153, %p154
      %p157 = scmp.ne.s32.totalorder %s140, %s156
      %p158 = scmp.eq.s32.totalorder %s22, 0
      %p159 = por %p157, %p158
      %p160 = scmp.le.s32.totalorder 1, %s16
      %p161 = scmp.lt.s32.totalorder %s16, 3
      %p162 = pnand %p160, %p161
      %p163 = pneg %p162
      // Predicated region
      $region9: #{tpu_custom_call.1} parent=5 // pred_check
        _
      $region10: #{tpu_custom_call.1} parent=5 // pred_check_branch
        %165 = sbr.rel (%p162) target = $region12
      $region11: #{tpu_custom_call.1} parent=5 // pred_region
        %s166 = ssub.s32 %s16, 1
        // Predicated region
        $region13: #{tpu_custom_call.1} parent=11 // pred_check
          %p167 = pneg %p63
        $region14: #{tpu_custom_call.1} parent=11 // pred_check_branch
          %169 = sbr.rel (%p167) target = $region16
        $region15: #{tpu_custom_call.1} parent=11 // pred_region
          %s171 = ssub.s32 256, 256
          %172 = vsyncadd [#allocation6], %s171
          %s173 = sshll.u32 [#allocation5], 4
          %s174 = int_to_ptr.vmem [resolvable:$true] %s173
          %179 = dma.hbm_to_vmem [thread:$0]  %s1, 256, %s174, [#allocation6], 128, 128, 8
        $region16: #{tpu_custom_call.1} parent=11 // pred_fallthru
          _
        // Predicated region
        $region17: #{tpu_custom_call.1} parent=11 // pred_check
          %p180 = pneg %p84
        $region18: #{tpu_custom_call.1} parent=11 // pred_check_branch
          %182 = sbr.rel (%p180) target = $region20
        $region19: #{tpu_custom_call.1} parent=11 // pred_region
          _
        $region20: #{tpu_custom_call.1} parent=11 // pred_fallthru
          _
        // Predicated region
        $region21: #{tpu_custom_call.1} parent=11 // pred_check
          %p183 = pneg %p105
        $region22: #{tpu_custom_call.1} parent=11 // pred_check_branch
          %185 = sbr.rel (%p183) target = $region24
        $region23: #{tpu_custom_call.1} parent=11 // pred_region
          _
        $region24: #{tpu_custom_call.1} parent=11 // pred_fallthru
          _
        // Predicated region
        $region25: #{tpu_custom_call.1} parent=11 // pred_check
          %p186 = pneg %p126
        $region26: #{tpu_custom_call.1} parent=11 // pred_check_branch
          %188 = sbr.rel (%p186) target = $region28
        $region27: #{tpu_custom_call.1} parent=11 // pred_region
          _
        $region28: #{tpu_custom_call.1} parent=11 // pred_fallthru
          _
      $region12: #{tpu_custom_call.1} parent=5 // pred_fallthru
        _
      %p189 = scmp.lt.s32.totalorder %s16, 2
      // Predicated region
      $region29: #{tpu_custom_call.1} parent=5 // pred_check
        %p190 = pneg %p189
      $region30: #{tpu_custom_call.1} parent=5 // pred_check_branch
        %192 = sbr.rel (%p190) target = $region32
      $region31: #{tpu_custom_call.1} parent=5 // pred_region
        // Predicated region
        $region33: #{tpu_custom_call.1} parent=31 // pred_check
          %p193 = pneg %p36
        $region34: #{tpu_custom_call.1} parent=31 // pred_check_branch
          %195 = sbr.rel (%p193) target = $region36
        $region35: #{tpu_custom_call.1} parent=31 // pred_region
          %s196 = sand.u32 %s26, 1
          %s197 = scalar_lea.sflag [#allocation4], %s196
          %s198 = sand.u32 %s26, 1
          %s199 = smul.addr %s198, 8
          %s200 = scalar_lea.vmem [#allocation3], %s199
          %s202 = ssub.s32 128, 128
          %203 = vsyncadd %s197, %s202
          %s204 = smul.addr %s16, 128
          %s205 = scalar_lea.hbm %s0, %s204
          %s207 = sshll.u32 %s200, 4
          %s208 = int_to_ptr.vmem [resolvable:$true] %s207
          %210 = dma.hbm_to_vmem [thread:$0]  %s205, 128, %s208, %s197
        $region36: #{tpu_custom_call.1} parent=31 // pred_fallthru
          _
      $region32: #{tpu_custom_call.1} parent=5 // pred_fallthru
        _
      %p211 = scmp.le.s32.totalorder 1, %s16
      %p212 = scmp.lt.s32.totalorder %s16, 3
      %p213 = pnand %p211, %p212
      %p214 = pneg %p213
      // Predicated region
      $region37: #{tpu_custom_call.1} parent=5 // pred_check
        _
      $region38: #{tpu_custom_call.1} parent=5 // pred_check_branch
        %216 = sbr.rel (%p213) target = $region40
      $region39: #{tpu_custom_call.1} parent=5 // pred_region
        %s217 = ssub.s32 %s16, 1
        %s218 = sand.u32 %s29, 1
        %s219 = scalar_lea.sflag [#allocation4], %s218
        %s220 = sand.u32 %s29, 1
        %s221 = smul.addr %s220, 8
        %s222 = scalar_lea.vmem [#allocation3], %s221
        // Predicated region
        $region41: #{tpu_custom_call.1} parent=39 // pred_check
          %p223 = pneg %p42
        $region42: #{tpu_custom_call.1} parent=39 // pred_check_branch
          %225 = sbr.rel (%p223) target = $region44
        $region43: #{tpu_custom_call.1} parent=39 // pred_region
          %226 = dma.done %s219, 128
        $region44: #{tpu_custom_call.1} parent=39 // pred_fallthru
          _
        // Predicated region
        $region45: #{tpu_custom_call.1} parent=39 // pred_check
          %p227 = pneg %p63
        $region46: #{tpu_custom_call.1} parent=39 // pred_check_branch
          %229 = sbr.rel (%p227) target = $region48
        $region47: #{tpu_custom_call.1} parent=39 // pred_region
          %230 = dma.done [#allocation6], 256
        $region48: #{tpu_custom_call.1} parent=39 // pred_fallthru
          _
        %s231 = sand.u32 %s29, 1
        %s232 = scalar_lea.sflag [#allocation4], %s231
        %s233 = sand.u32 %s29, 1
        %s234 = smul.addr %s233, 8
        %s235 = scalar_lea.vmem [#allocation3], %s234
        %p236 = pneg %p42
        %p237 = pneg %p39
        %p238 = pneg %p63
        %p239 = pneg %p60
        %p240 = pneg %p84
        %p241 = pneg %p81
        %p242 = pneg %p105
        %p243 = pneg %p102
        %p244 = pneg %p126
        %p245 = pneg %p123
        %p246 = pneg %p152
        %p247 = pneg %p149
        %p248 = scmp.lt.s32.totalorder %s21, 1
        %s249 = scalar_select %p248, %s21, 1
        %s250 = smul.addr %s249, 8
        %s251 = scalar_lea.vmem %s5, %s250
        %p252 = scmp.lt.s32.totalorder %s21, 1
        %s253 = scalar_select %p252, %s21, 1
        %s254 = smul.addr %s253, 8
        %s255 = scalar_lea.vmem %s5, %s254
        %v256 = vld [vmem:[%s222] sm:$0xff]
        %v257 = vld [vmem:[#allocation5] sm:$0xff]
        %v258 = vld [vmem:[#allocation5 + $0x8] sm:$0xff]
        %v259 = vld [vmem:[%s2] sm:$0x1]
        %v261 = vlaneseq
        %v262 = vshrl.u32 %v261, 7
        %v263 = vsub.s32 0, %v262
        %v264 = vrot.slane %v259, %v263
        %vm266 = vcmask 130048
        %v268 = vsel %vm266, %v256, 0
        %270 = vmatprep.subr.mxu0 0.0
        %271 = vmatpush1.msra.mxu0 0.0
        %272 = vmatprep.subr.mxu0 0.0
        %273 = vmatpush1.msra.mxu0 0.0
        %274 = vmatprep.subr.mxu0 0.0
        %275 = vmatpush1.msra.mxu0 0.0
        %276 = vmatprep.subr.mxu0 0.0
        %277 = vmatpush1.msra.mxu0 0.0
        %278 = vmatprep.subr.mxu0 0.0
        %279 = vmatpush1.msra.mxu0 0.0
        %280 = vmatprep.subr.mxu0 0.0
        %281 = vmatpush1.msra.mxu0 0.0
        %282 = vmatprep.subr.mxu0 0.0
        %283 = vmatpush1.msra.mxu0 0.0
        %284 = vmatprep.subr.mxu0 0.0
        %285 = vmatpush1.msra.mxu0 0.0
        %286 = vmatprep.subr.mxu0 0.0
        %287 = vmatpush1.msra.mxu0 0.0
        %288 = vmatprep.subr.mxu0 0.0
        %289 = vmatpush1.msra.mxu0 0.0
        %290 = vmatprep.subr.mxu0 0.0
        %291 = vmatpush1.msra.mxu0 0.0
        %292 = vmatprep.subr.mxu0 0.0
        %293 = vmatpush1.msra.mxu0 0.0
        %294 = vmatprep.subr.mxu0 0.0
        %295 = vmatpush1.msra.mxu0 0.0
        %296 = vmatprep.subr.mxu0 0.0
        %297 = vmatpush1.msra.mxu0 0.0
        %298 = vmatprep.subr.mxu0 0.0
        %299 = vmatpush1.msra.mxu0 %v258
        %300 = vmatprep.subr.mxu0 0.0
        %301 = vmatpush1.msra.mxu0 %v257
        %302 = vmatprep.subr.mxu0 0.0
        %303 = vmatpush2.msra.mxu0 0.0
        %304 = vmatprep.subr.mxu0 0.0
        %305 = vmatpush2.msra.mxu0 0.0
        %306 = vmatprep.subr.mxu0 0.0
        %307 = vmatpush2.msra.mxu0 0.0
        %308 = vmatprep.subr.mxu0 0.0
        %309 = vmatpush2.msra.mxu0 0.0
        %310 = vmatprep.subr.mxu0 0.0
        %311 = vmatpush2.msra.mxu0 0.0
        %312 = vmatprep.subr.mxu0 0.0
        %313 = vmatpush2.msra.mxu0 0.0
        %314 = vmatprep.subr.mxu0 0.0
        %315 = vmatpush2.msra.mxu0 0.0
        %316 = vmatprep.subr.mxu0 0.0
        %317 = vmatpush2.msra.mxu0 0.0
        %318 = vmatprep.subr.mxu0 0.0
        %319 = vmatpush2.msra.mxu0 0.0
        %320 = vmatprep.subr.mxu0 0.0
        %321 = vmatpush2.msra.mxu0 0.0
        %322 = vmatprep.subr.mxu0 0.0
        %323 = vmatpush2.msra.mxu0 0.0
        %324 = vmatprep.subr.mxu0 0.0
        %325 = vmatpush2.msra.mxu0 0.0
        %326 = vmatprep.subr.mxu0 0.0
        %327 = vmatpush2.msra.mxu0 0.0
        %328 = vmatprep.subr.mxu0 0.0
        %329 = vmatpush2.msra.mxu0 0.0
        %330 = vmatprep.subr.mxu0 0.0
        %331 = vmatpush2.msra.mxu0 0.0
        %332 = vmatprep.subr.mxu0 0.0
        %333 = vmatpush2.msra.mxu0 0.0
        %334 = vmatprep.mubr.f32.mxu0 0.0
        %335 = vmatmul.mubr.f32.gmra.mxu0 %v268
        %v336 = vpop.f32.mrf.mxu0
        %v337 = vadd.f32 %v264, %v336
        %v338 = vpop.f32.mrf.mxu0
        %339 = vdwg.mxu0
        %v340 = vmax.f32 %v337, 0.0
        %v341 = vld [vmem:[%s3] sm:$0x1]
        %v343 = vlaneseq
        %v344 = vshrl.u32 %v343, 7
        %v345 = vsub.s32 0, %v344
        %v346 = vrot.slane %v341, %v345
        %v348 = vmul.f32 %v340, %v346
        %vm349 = vcmask 261120
        %v350 = vsel %vm349, %v348, 0.0
        %351 = vadd.xlane.f32.xlu0 %v350
        %v352 = vpop.xlane.xlu0 %351
        %s353 = sld [smem:[#allocation2]]
        %v354 = vstv %s353
        %v355 = vadd.f32 %v352, %v354
        %v356 = vmul.f32 %v355, 0.5
        %v357 = vtanh.pop %v356
        %v358 = vadd.f32 %v357, 1.0
        %v359 = vmul.f32 %v358, 0.5
        %vm360 = vcmask 7168
        %361 = vst.msk [vmem:[%s255] sm:$0xff] %vm360, %v359
        %p362 = scmp.lt.s32.totalorder %s21, 1
        %s363 = scalar_select %p362, %s21, 1
        %s364 = smul.addr %s363, 8
        %s365 = scalar_lea.vmem %s5, %s364
        // Predicated region
        $region49: #{tpu_custom_call.1} parent=39 // pred_check
          %p366 = pneg %p149
        $region50: #{tpu_custom_call.1} parent=39 // pred_check_branch
          %368 = sbr.rel (%p366) target = $region52
        $region51: #{tpu_custom_call.1} parent=39 // pred_region
          _
        $region52: #{tpu_custom_call.1} parent=39 // pred_fallthru
          _
      $region40: #{tpu_custom_call.1} parent=5 // pred_fallthru
        _
      %p369 = scmp.le.s32.totalorder 2, %s16
      // Predicated region
      $region53: #{tpu_custom_call.1} parent=5 // pred_check
        %p370 = pneg %p369
      $region54: #{tpu_custom_call.1} parent=5 // pred_check_branch
        %372 = sbr.rel (%p370) target = $region56
      $region55: #{tpu_custom_call.1} parent=5 // pred_region
        %s373 = ssub.s32 %s16, 2
        // Predicated region
        $region57: #{tpu_custom_call.1} parent=55 // pred_check
          %p374 = pneg %p155
        $region58: #{tpu_custom_call.1} parent=55 // pred_check_branch
          %376 = sbr.rel (%p374) target = $region60
        $region59: #{tpu_custom_call.1} parent=55 // pred_region
          %p377 = scmp.lt.s32.totalorder %s22, 1
          %s378 = scalar_select %p377, %s22, 1
          %s379 = smul.addr %s378, 8
          %s380 = scalar_lea.vmem %s5, %s379
        $region60: #{tpu_custom_call.1} parent=55 // pred_fallthru
          _
      $region56: #{tpu_custom_call.1} parent=5 // pred_fallthru
        _
    $region6: #{tpu_custom_call.1} parent=1 // loop_footer
      %s20 = sadd.s32 1, %s16
    $region7: #{tpu_custom_call.1} parent=1 // loop_footer_branch
      %15 = sbr.rel target = $region3
    $region8: #{tpu_custom_call.1} parent=1 // loop_exit
      _
    %381 = vsyncpa [#allocation4], 1
    %s382 = scalar_lea.sflag [#allocation4], 1
    %383 = vsyncpa %s382, 1
    %384 = vsyncpa [#allocation6], 1

</llo_original>
